<compile_context>
chip_gen: v6e
topology: v6e:2x2x1
jax: 0.10.0
libtpu: 0.0.40
codegen_flags: <defaults>
</compile_context>

<pallas_src>
import functools

import jax
import jax.numpy as jnp
from jax.experimental import pallas as pl
from jax.experimental.pallas import tpu as pltpu

EPS = 1e-6


# ---------------------------------------------------------------------------
# Fused kernel: entire network in one pallas_call
# ---------------------------------------------------------------------------
def _fused_eql_kernel(n_layers, x_ref, *rest):
    """Fused polinomial_EQL_network forward.

    x_ref : (TB, F_in0) batch tile of the input.
    rest  : n_layers groups of (w1t_ref, w23t_ref, b_ref), then o_ref.
        w1t_ref  : (F_in_l, H)          -- power-branch first linear, transposed
        w23t_ref : (H + F_in_l, F_out_l) -- vstack of [W2^T, W3^T] (merged matmul)
        b_ref    : (1, F_out_l)          -- linear-branch bias
    o_ref : (TB, F_out_last)
    """
    o_ref = rest[-1]
    w_refs = rest[:-1]

    act = x_ref[...].astype(jnp.float32)
    for l in range(n_layers):  # static unroll; activations stay in VMEM/vregs
        w1t = w_refs[3 * l][...]
        w23t = w_refs[3 * l + 1][...]
        b = w_refs[3 * l + 2][...]

        # power branch hidden state: exp(log|x| @ W1^T)
        hidden = jnp.exp(
            jnp.dot(jnp.log(jnp.abs(act) + EPS), w1t,
                    preferred_element_type=jnp.float32)
        )
        # merged MXU pass: hidden @ W2^T + act @ W3^T  ==  [hidden, act] @ [W2^T; W3^T]
        cat = jnp.concatenate([hidden, act], axis=-1)
        act = jnp.dot(cat, w23t, preferred_element_type=jnp.float32) + b

    o_ref[...] = act.astype(o_ref.dtype)


def fused_eql_forward(x, kernel_params):
    """Run the whole network as a single Pallas kernel.

    x             : (B, F_in) float32
    kernel_params : tuple of (w1t, w23t, b2) per layer (pre-transposed, pre-merged)
    returns (B, F_out_last) float32
    """
    B, F_in = x.shape
    n_layers = len(kernel_params)
    F_out = kernel_params[-1][1].shape[1]

    # Batch tiling: single block at toy sizes, 512-row tiles (multiple of 8
    # sublanes) when the batch is large enough to benefit from pipelining.
    TB = B if B <= 512 else 512
    grid = (pl.cdiv(B, TB),)

    in_specs = [pl.BlockSpec((TB, F_in), lambda i: (i, 0))]
    flat_weights = []
    for (w1t, w23t, b2) in kernel_params:
        # Weights are resident across all batch tiles (block index (0, 0)).
        in_specs.append(pl.BlockSpec(w1t.shape, lambda i: (0, 0)))
        in_specs.append(pl.BlockSpec(w23t.shape, lambda i: (0, 0)))
        in_specs.append(pl.BlockSpec(b2.shape, lambda i: (0, 0)))
        flat_weights.extend([w1t, w23t, b2])

    out_spec = pl.BlockSpec((TB, F_out), lambda i: (i, 0))

    kernel = functools.partial(_fused_eql_kernel, n_layers)

    return pl.pallas_call(
        kernel,
        out_shape=jax.ShapeDtypeStruct((B, F_out), jnp.float32),
        grid=grid,
        in_specs=in_specs,
        out_specs=out_spec,
        compiler_params=pltpu.CompilerParams(
            dimension_semantics=("parallel",)),
    )(x, *flat_weights)


# Layer count / shapes are encoded in the static pytree structure of
# kernel_params, so no static_argnums are needed.
polinomial_eql_network = jax.jit(fused_eql_forward)


# ---------------------------------------------------------------------------
# Parameter construction / preprocessing
# ---------------------------------------------------------------------------
def init_layer_params(key, in_features, h_state, out_features):
    k1, k2, k3, k4 = jax.random.split(key, 4)
    # Deterministic, small-magnitude init (synthetic weights, not a checkpoint).
    w1 = 0.1 * jax.random.normal(k1, (h_state, in_features), jnp.float32)
    w2 = 0.1 * jax.random.normal(k2, (out_features, h_state), jnp.float32)
    w3 = 0.1 * jax.random.normal(k3, (out_features, in_features), jnp.float32)
    b = 0.1 * jax.random.normal(k4, (out_features,), jnp.float32)
    return (w1, w2, w3, b)


def init_network_params(key, in_features, n_layers, h_state_net, h_state_layer, output=1):
    k_first, k_mid, k_last = jax.random.split(key, 3)
    first = init_layer_params(k_first, in_features, h_state_layer, h_state_net)
    middle = init_layer_params(k_mid, h_state_net, h_state_layer, h_state_net)
    last = init_layer_params(k_last, h_state_net, h_state_layer, output)
    # middle layer instance is SHARED (n_layers - 2) times, matching the PyTorch
    # list-multiplication of a single module instance.
    return [first] + [middle] * (n_layers - 2) + [last]


def to_kernel_params(params):
    """One-time preprocessing: transpose + merge W2/W3, reshape bias."""
    kernel_params = []
    for (w1, w2, w3, b) in params:
        w1t = jnp.transpose(w1)                                   # (F_in, H)
        w23t = jnp.concatenate(
            [jnp.transpose(w2), jnp.transpose(w3)], axis=0)       # (H + F_in, F_out)
        b2 = b.reshape(1, -1)                                     # (1, F_out)
        kernel_params.append((w1t, w23t, b2))
    return tuple(kernel_params)


# ---------------------------------------------------------------------------
# Pure-JAX reference (matches the stated semantics layer-by-layer)
# ---------------------------------------------------------------------------
def reference_forward(x, params):
    out = x
    for (w1, w2, w3, b) in params:
        hidden = jnp.exp(jnp.log(jnp.abs(out) + EPS) @ w1.T)
        power_out = hidden @ w2.T
        linear_out = out @ w3.T + b
        out = power_out + linear_out
    return out


if __name__ == "__main__":
    # Small shapes consistent with the module's forward (x: (batch, in_features)).
    batch = 2
    in_features = 4
    n_layers = 3
    h_state_net = 8
    h_state_layer = 32
    output = 1

    key = jax.random.PRNGKey(0)
    k_x, k_p = jax.random.split(key)
    x = jax.random.normal(k_x, (batch, in_features), jnp.float32)

    params = init_network_params(
        k_p, in_features, n_layers, h_state_net, h_state_layer, output)
    kernel_params = to_kernel_params(params)

    y = polinomial_eql_network(x, kernel_params)
    y = jax.block_until_ready(y)

    y_ref = reference_forward(x, params)
    assert y.shape == (batch, output), y.shape
    assert jnp.allclose(y, y_ref, rtol=1e-4, atol=1e-4), (y, y_ref)

    print("KERNEL_OK")
</pallas_src>

<mosaic_0001>
module attributes {stable_mosaic.version = 11 : i64} {
  func.func @_fused_eql_kernel(%arg0: i32, %arg1: memref<2x4xf32, #tpu.memory_space<vmem>>, %arg2: memref<4x32xf32, #tpu.memory_space<vmem>>, %arg3: memref<36x8xf32, #tpu.memory_space<vmem>>, %arg4: memref<1x8xf32, #tpu.memory_space<vmem>>, %arg5: memref<8x32xf32, #tpu.memory_space<vmem>>, %arg6: memref<40x8xf32, #tpu.memory_space<vmem>>, %arg7: memref<1x8xf32, #tpu.memory_space<vmem>>, %arg8: memref<8x32xf32, #tpu.memory_space<vmem>>, %arg9: memref<40x1xf32, #tpu.memory_space<vmem>>, %arg10: memref<1x1xf32, #tpu.memory_space<vmem>>, %arg11: memref<2x1xf32, #tpu.memory_space<vmem>>) attributes {dimension_semantics = [#tpu.dimension_semantics<parallel>], iteration_bounds = array<i64: 1>, scalar_prefetch = 0 : i64, scratch_operands = 0 : i64, tpu.core_type = #tpu.core_type<tc>, window_params = [{transform_indices = @transform_0, window_bounds = array<i64: 2, 4>}, {pipeline_mode = #tpu.pipeline_mode<synchronous>, transform_indices = @transform_1, window_bounds = array<i64: 4, 32>}, {pipeline_mode = #tpu.pipeline_mode<synchronous>, transform_indices = @transform_2, window_bounds = array<i64: 36, 8>}, {pipeline_mode = #tpu.pipeline_mode<synchronous>, transform_indices = @transform_3, window_bounds = array<i64: 1, 8>}, {pipeline_mode = #tpu.pipeline_mode<synchronous>, transform_indices = @transform_4, window_bounds = array<i64: 8, 32>}, {pipeline_mode = #tpu.pipeline_mode<synchronous>, transform_indices = @transform_5, window_bounds = array<i64: 40, 8>}, {pipeline_mode = #tpu.pipeline_mode<synchronous>, transform_indices = @transform_6, window_bounds = array<i64: 1, 8>}, {pipeline_mode = #tpu.pipeline_mode<synchronous>, transform_indices = @transform_7, window_bounds = array<i64: 8, 32>}, {pipeline_mode = #tpu.pipeline_mode<synchronous>, transform_indices = @transform_8, window_bounds = array<i64: 40, 1>}, {pipeline_mode = #tpu.pipeline_mode<synchronous>, transform_indices = @transform_9, window_bounds = array<i64: 1, 1>}, {transform_indices = @transform_10, window_bounds = array<i64: 2, 1>}]} {
    %c0 = arith.constant 0 : index
    %c0_0 = arith.constant 0 : index
    %0 = vector.load %arg1[%c0, %c0_0] : memref<2x4xf32, #tpu.memory_space<vmem>>, vector<2x4xf32>
    %c0_1 = arith.constant 0 : index
    %c0_2 = arith.constant 0 : index
    %1 = vector.load %arg2[%c0_1, %c0_2] : memref<4x32xf32, #tpu.memory_space<vmem>>, vector<4x32xf32>
    %c0_3 = arith.constant 0 : index
    %c0_4 = arith.constant 0 : index
    %2 = vector.load %arg3[%c0_3, %c0_4] : memref<36x8xf32, #tpu.memory_space<vmem>>, vector<36x8xf32>
    %c0_5 = arith.constant 0 : index
    %c0_6 = arith.constant 0 : index
    %3 = vector.load %arg4[%c0_5, %c0_6] : memref<1x8xf32, #tpu.memory_space<vmem>>, vector<1x8xf32>
    %4 = math.absf %0 : vector<2x4xf32>
    %cst = arith.constant 9.99999997E-7 : f32
    %5 = vector.broadcast %cst : f32 to vector<2x4xf32>
    %6 = arith.addf %4, %5 : vector<2x4xf32>
    %7 = math.log %6 : vector<2x4xf32>
    %cst_7 = arith.constant dense<0.000000e+00> : vector<2x32xf32>
    %8 = tpu.matmul %7, %1, %cst_7 {dimension_numbers = #tpu.dot_dimension_numbers<[1], [0], [0], [1], [0, 0, 1, 1], [], []>} : vector<2x4xf32>, vector<4x32xf32>, vector<2x32xf32> -> vector<2x32xf32>
    %9 = math.exp %8 : vector<2x32xf32>
    %10 = tpu.concatenate %9, %0 in 1 : vector<2x32xf32>, vector<2x4xf32> -> vector<2x36xf32>
    %cst_8 = arith.constant dense<0.000000e+00> : vector<2x8xf32>
    %11 = tpu.matmul %10, %2, %cst_8 {dimension_numbers = #tpu.dot_dimension_numbers<[1], [0], [0], [1], [0, 0, 1, 1], [], []>} : vector<2x36xf32>, vector<36x8xf32>, vector<2x8xf32> -> vector<2x8xf32>
    %12 = vector.broadcast %3 : vector<1x8xf32> to vector<2x8xf32>
    %13 = arith.addf %11, %12 : vector<2x8xf32>
    %c0_9 = arith.constant 0 : index
    %c0_10 = arith.constant 0 : index
    %14 = vector.load %arg5[%c0_9, %c0_10] : memref<8x32xf32, #tpu.memory_space<vmem>>, vector<8x32xf32>
    %c0_11 = arith.constant 0 : index
    %c0_12 = arith.constant 0 : index
    %15 = vector.load %arg6[%c0_11, %c0_12] : memref<40x8xf32, #tpu.memory_space<vmem>>, vector<40x8xf32>
    %c0_13 = arith.constant 0 : index
    %c0_14 = arith.constant 0 : index
    %16 = vector.load %arg7[%c0_13, %c0_14] : memref<1x8xf32, #tpu.memory_space<vmem>>, vector<1x8xf32>
    %17 = math.absf %13 : vector<2x8xf32>
    %cst_15 = arith.constant 9.99999997E-7 : f32
    %18 = vector.broadcast %cst_15 : f32 to vector<2x8xf32>
    %19 = arith.addf %17, %18 : vector<2x8xf32>
    %20 = math.log %19 : vector<2x8xf32>
    %cst_16 = arith.constant dense<0.000000e+00> : vector<2x32xf32>
    %21 = tpu.matmul %20, %14, %cst_16 {dimension_numbers = #tpu.dot_dimension_numbers<[1], [0], [0], [1], [0, 0, 1, 1], [], []>} : vector<2x8xf32>, vector<8x32xf32>, vector<2x32xf32> -> vector<2x32xf32>
    %22 = math.exp %21 : vector<2x32xf32>
    %23 = tpu.concatenate %22, %13 in 1 : vector<2x32xf32>, vector<2x8xf32> -> vector<2x40xf32>
    %cst_17 = arith.constant dense<0.000000e+00> : vector<2x8xf32>
    %24 = tpu.matmul %23, %15, %cst_17 {dimension_numbers = #tpu.dot_dimension_numbers<[1], [0], [0], [1], [0, 0, 1, 1], [], []>} : vector<2x40xf32>, vector<40x8xf32>, vector<2x8xf32> -> vector<2x8xf32>
    %25 = vector.broadcast %16 : vector<1x8xf32> to vector<2x8xf32>
    %26 = arith.addf %24, %25 : vector<2x8xf32>
    %c0_18 = arith.constant 0 : index
    %c0_19 = arith.constant 0 : index
    %27 = vector.load %arg8[%c0_18, %c0_19] : memref<8x32xf32, #tpu.memory_space<vmem>>, vector<8x32xf32>
    %c0_20 = arith.constant 0 : index
    %c0_21 = arith.constant 0 : index
    %28 = vector.load %arg9[%c0_20, %c0_21] : memref<40x1xf32, #tpu.memory_space<vmem>>, vector<40x1xf32>
    %c0_22 = arith.constant 0 : index
    %c0_23 = arith.constant 0 : index
    %29 = vector.load %arg10[%c0_22, %c0_23] : memref<1x1xf32, #tpu.memory_space<vmem>>, vector<1x1xf32>
    %30 = math.absf %26 : vector<2x8xf32>
    %cst_24 = arith.constant 9.99999997E-7 : f32
    %31 = vector.broadcast %cst_24 : f32 to vector<2x8xf32>
    %32 = arith.addf %30, %31 : vector<2x8xf32>
    %33 = math.log %32 : vector<2x8xf32>
    %cst_25 = arith.constant dense<0.000000e+00> : vector<2x32xf32>
    %34 = tpu.matmul %33, %27, %cst_25 {dimension_numbers = #tpu.dot_dimension_numbers<[1], [0], [0], [1], [0, 0, 1, 1], [], []>} : vector<2x8xf32>, vector<8x32xf32>, vector<2x32xf32> -> vector<2x32xf32>
    %35 = math.exp %34 : vector<2x32xf32>
    %36 = tpu.concatenate %35, %26 in 1 : vector<2x32xf32>, vector<2x8xf32> -> vector<2x40xf32>
    %cst_26 = arith.constant dense<0.000000e+00> : vector<2x1xf32>
    %37 = tpu.matmul %36, %28, %cst_26 {dimension_numbers = #tpu.dot_dimension_numbers<[1], [0], [0], [1], [0, 0, 1, 1], [], []>} : vector<2x40xf32>, vector<40x1xf32>, vector<2x1xf32> -> vector<2x1xf32>
    %38 = vector.broadcast %29 : vector<1x1xf32> to vector<2x1xf32>
    %39 = arith.addf %37, %38 : vector<2x1xf32>
    %c0_27 = arith.constant 0 : index
    %c0_28 = arith.constant 0 : index
    %40 = vector.load %arg11[%c0_27, %c0_28] : memref<2x1xf32, #tpu.memory_space<vmem>>, vector<2x1xf32>
    tpu.vector_store %arg11[%c0_27, %c0_28], %39 {strides = array<i32>} : memref<2x1xf32, #tpu.memory_space<vmem>>, vector<2x1xf32>,
    return
  }
  func.func @transform_0(%arg0: i32) -> (i32, i32) {
    %c0_i32 = arith.constant 0 : i32
    %c0_i32_0 = arith.constant 0 : i32
    return %arg0, %c0_i32 : i32, i32
  }
  func.func @transform_1(%arg0: i32) -> (i32, i32) {
    %c0_i32 = arith.constant 0 : i32
    %c0_i32_0 = arith.constant 0 : i32
    %c0_i32_1 = arith.constant 0 : i32
    return %c0_i32, %c0_i32_0 : i32, i32
  }
  func.func @transform_2(%arg0: i32) -> (i32, i32) {
    %c0_i32 = arith.constant 0 : i32
    %c0_i32_0 = arith.constant 0 : i32
    %c0_i32_1 = arith.constant 0 : i32
    return %c0_i32, %c0_i32_0 : i32, i32
  }
  func.func @transform_3(%arg0: i32) -> (i32, i32) {
    %c0_i32 = arith.constant 0 : i32
    %c0_i32_0 = arith.constant 0 : i32
    %c0_i32_1 = arith.constant 0 : i32
    return %c0_i32, %c0_i32_0 : i32, i32
  }
  func.func @transform_4(%arg0: i32) -> (i32, i32) {
    %c0_i32 = arith.constant 0 : i32
    %c0_i32_0 = arith.constant 0 : i32
    %c0_i32_1 = arith.constant 0 : i32
    return %c0_i32, %c0_i32_0 : i32, i32
  }
  func.func @transform_5(%arg0: i32) -> (i32, i32) {
    %c0_i32 = arith.constant 0 : i32
    %c0_i32_0 = arith.constant 0 : i32
    %c0_i32_1 = arith.constant 0 : i32
    return %c0_i32, %c0_i32_0 : i32, i32
  }
  func.func @transform_6(%arg0: i32) -> (i32, i32) {
    %c0_i32 = arith.constant 0 : i32
    %c0_i32_0 = arith.constant 0 : i32
    %c0_i32_1 = arith.constant 0 : i32
    return %c0_i32, %c0_i32_0 : i32, i32
  }
  func.func @transform_7(%arg0: i32) -> (i32, i32) {
    %c0_i32 = arith.constant 0 : i32
    %c0_i32_0 = arith.constant 0 : i32
    %c0_i32_1 = arith.constant 0 : i32
    return %c0_i32, %c0_i32_0 : i32, i32
  }
  func.func @transform_8(%arg0: i32) -> (i32, i32) {
    %c0_i32 = arith.constant 0 : i32
    %c0_i32_0 = arith.constant 0 : i32
    %c0_i32_1 = arith.constant 0 : i32
    return %c0_i32, %c0_i32_0 : i32, i32
  }
  func.func @transform_9(%arg0: i32) -> (i32, i32) {
    %c0_i32 = arith.constant 0 : i32
    %c0_i32_0 = arith.constant 0 : i32
    %c0_i32_1 = arith.constant 0 : i32
    return %c0_i32, %c0_i32_0 : i32, i32
  }
  func.func @transform_10(%arg0: i32) -> (i32, i32) {
    %c0_i32 = arith.constant 0 : i32
    %c0_i32_0 = arith.constant 0 : i32
    return %arg0, %c0_i32 : i32, i32
  }
}

</mosaic_0001>

<llo_original>
// kernel: fused_eql_forward.1
$region0: #{fused_eql_forward.1}
  #allocation0 [shape = 'u32[]', space=smem, size = 0x4, offset = 0x4, fixed_abs, tag = 'smem constant byte address 0x4 - core index']
  #allocation1 [shape = 'u32[144,128]{1,0:T(1,128)}', space=vmem, size = 0x12000, scoped, tag = 'internal scratch']
  #allocation2 [shape = 'f32[1,1]{1,0:T(1,128)S(1)}', space=vmem, size = 0x200, scoped, tag = 'scoped memory for fused_eql_forward.1']
  %s0 = inlined_call_operand.vmem [shape: f32[2,4], index: 0, kind: input, shape index: {}]
  %s1 = inlined_call_operand.vmem [shape: f32[4,32], index: 1, kind: input, shape index: {}]
  %s2 = inlined_call_operand.vmem [shape: f32[36,8], index: 2, kind: input, shape index: {}]
  %s3 = inlined_call_operand.vmem [shape: f32[1,8], index: 3, kind: input, shape index: {}]
  %s4 = inlined_call_operand.vmem [shape: f32[8,32], index: 4, kind: input, shape index: {}]
  %s5 = inlined_call_operand.vmem [shape: f32[40,8], index: 5, kind: input, shape index: {}]
  %s6 = inlined_call_operand.vmem [shape: f32[1,8], index: 6, kind: input, shape index: {}]
  %s7 = inlined_call_operand.vmem [shape: f32[8,32], index: 7, kind: input, shape index: {}]
  %s8 = inlined_call_operand.vmem [shape: f32[40,1], index: 8, kind: input, shape index: {}]
  %s9 = inlined_call_operand.<no memory space> [shape: f32[1,1], index: 9, kind: input, shape index: {}]
  %s10 = inlined_call_operand.vmem [shape: f32[2,1], index: 10, kind: output, shape index: {}]
  %s11 = sld [smem:[#allocation0]]
  $region50: #{fused_eql_forward.1} parent=0
    _
  %s13 = ssub.s32 1, %s11
  %s14 = scalar_select 0, %s13, %s11
  %v15 = vstv %s9
  %16 = vst [vmem:[#allocation2] sm:$0x1] %v15
  // Predicated region
  $region2: #{fused_eql_forward.1} parent=0 // pred_check
    _
  $region3: #{fused_eql_forward.1} parent=0 // pred_check_branch
    %18 = sbr.rel (0) target = $region5
  $region4: #{fused_eql_forward.1} parent=0 // pred_region
    _
  $region5: #{fused_eql_forward.1} parent=0 // pred_fallthru
    _
  // Predicated region
  $region6: #{fused_eql_forward.1} parent=0 // pred_check
    _
  $region7: #{fused_eql_forward.1} parent=0 // pred_check_branch
    %20 = sbr.rel (0) target = $region9
  $region8: #{fused_eql_forward.1} parent=0 // pred_region
    _
  $region9: #{fused_eql_forward.1} parent=0 // pred_fallthru
    _
  // Predicated region
  $region10: #{fused_eql_forward.1} parent=0 // pred_check
    _
  $region11: #{fused_eql_forward.1} parent=0 // pred_check_branch
    %22 = sbr.rel (0) target = $region13
  $region12: #{fused_eql_forward.1} parent=0 // pred_region
    _
  $region13: #{fused_eql_forward.1} parent=0 // pred_fallthru
    _
  // Predicated region
  $region14: #{fused_eql_forward.1} parent=0 // pred_check
    _
  $region15: #{fused_eql_forward.1} parent=0 // pred_check_branch
    %24 = sbr.rel (0) target = $region17
  $region16: #{fused_eql_forward.1} parent=0 // pred_region
    _
  $region17: #{fused_eql_forward.1} parent=0 // pred_fallthru
    _
  // Predicated region
  $region18: #{fused_eql_forward.1} parent=0 // pred_check
    _
  $region19: #{fused_eql_forward.1} parent=0 // pred_check_branch
    %26 = sbr.rel (0) target = $region21
  $region20: #{fused_eql_forward.1} parent=0 // pred_region
    _
  $region21: #{fused_eql_forward.1} parent=0 // pred_fallthru
    _
  // Predicated region
  $region22: #{fused_eql_forward.1} parent=0 // pred_check
    _
  $region23: #{fused_eql_forward.1} parent=0 // pred_check_branch
    %28 = sbr.rel (0) target = $region25
  $region24: #{fused_eql_forward.1} parent=0 // pred_region
    _
  $region25: #{fused_eql_forward.1} parent=0 // pred_fallthru
    _
  // Predicated region
  $region26: #{fused_eql_forward.1} parent=0 // pred_check
    _
  $region27: #{fused_eql_forward.1} parent=0 // pred_check_branch
    %30 = sbr.rel (0) target = $region29
  $region28: #{fused_eql_forward.1} parent=0 // pred_region
    _
  $region29: #{fused_eql_forward.1} parent=0 // pred_fallthru
    _
  // Predicated region
  $region30: #{fused_eql_forward.1} parent=0 // pred_check
    _
  $region31: #{fused_eql_forward.1} parent=0 // pred_check_branch
    %32 = sbr.rel (0) target = $region33
  $region32: #{fused_eql_forward.1} parent=0 // pred_region
    _
  $region33: #{fused_eql_forward.1} parent=0 // pred_fallthru
    _
  // Predicated region
  $region34: #{fused_eql_forward.1} parent=0 // pred_check
    _
  $region35: #{fused_eql_forward.1} parent=0 // pred_check_branch
    %34 = sbr.rel (0) target = $region37
  $region36: #{fused_eql_forward.1} parent=0 // pred_region
    _
  $region37: #{fused_eql_forward.1} parent=0 // pred_fallthru
    _
  // Predicated region
  $region38: #{fused_eql_forward.1} parent=0 // pred_check
    _
  $region39: #{fused_eql_forward.1} parent=0 // pred_check_branch
    %36 = sbr.rel (0) target = $region41
  $region40: #{fused_eql_forward.1} parent=0 // pred_region
    _
  $region41: #{fused_eql_forward.1} parent=0 // pred_fallthru
    _
  %v37 = vld [vmem:[%s0] sm:$0x3]
  %v38 = vld [vmem:[%s1] sm:$0xf]
  %v39 = vld [vmem:[%s2] sm:$0xff]
  %v40 = vld [vmem:[%s2 + $0x8] sm:$0xff]
  %v41 = vld [vmem:[%s2 + $0x10] sm:$0xff]
  %v42 = vld [vmem:[%s2 + $0x18] sm:$0xff]
  %v43 = vld [vmem:[%s2 + $0x20] sm:$0xf]
  %v44 = vld [vmem:[%s3] sm:$0x1]
  %v45 = vand.u32 2147483647, %v37
  %v46 = vadd.f32 %v45, 1e-06
  %v47 = vlog2.pop %v46
  %v48 = vmul.f32 %v47, 0.6931472
  %vm49 = vcmask 31744
  %v51 = vsel %vm49, %v48, 0
  %vm53 = vcmask 1043456
  %v55 = vsel %vm53, %v38, 0
  %57 = vmatprep.subr.mxu0 0.0
  %58 = vmatpush1.msra.mxu0 0.0
  %59 = vmatprep.subr.mxu0 0.0
  %60 = vmatpush1.msra.mxu0 0.0
  %61 = vmatprep.subr.mxu0 0.0
  %62 = vmatpush1.msra.mxu0 0.0
  %63 = vmatprep.subr.mxu0 0.0
  %64 = vmatpush1.msra.mxu0 0.0
  %65 = vmatprep.subr.mxu0 0.0
  %66 = vmatpush1.msra.mxu0 0.0
  %67 = vmatprep.subr.mxu0 0.0
  %68 = vmatpush1.msra.mxu0 0.0
  %69 = vmatprep.subr.mxu0 0.0
  %70 = vmatpush1.msra.mxu0 0.0
  %71 = vmatprep.subr.mxu0 0.0
  %72 = vmatpush1.msra.mxu0 0.0
  %73 = vmatprep.subr.mxu0 0.0
  %74 = vmatpush1.msra.mxu0 0.0
  %75 = vmatprep.subr.mxu0 0.0
  %76 = vmatpush1.msra.mxu0 0.0
  %77 = vmatprep.subr.mxu0 0.0
  %78 = vmatpush1.msra.mxu0 0.0
  %79 = vmatprep.subr.mxu0 0.0
  %80 = vmatpush1.msra.mxu0 0.0
  %81 = vmatprep.subr.mxu0 0.0
  %82 = vmatpush1.msra.mxu0 0.0
  %83 = vmatprep.subr.mxu0 0.0
  %84 = vmatpush1.msra.mxu0 0.0
  %85 = vmatprep.subr.mxu0 0.0
  %86 = vmatpush1.msra.mxu0 0.0
  %87 = vmatprep.subr.mxu0 0.0
  %88 = vmatpush1.msra.mxu0 %v55
  %89 = vmatprep.subr.mxu0 0.0
  %90 = vmatpush2.msra.mxu0 0.0
  %91 = vmatprep.subr.mxu0 0.0
  %92 = vmatpush2.msra.mxu0 0.0
  %93 = vmatprep.subr.mxu0 0.0
  %94 = vmatpush2.msra.mxu0 0.0
  %95 = vmatprep.subr.mxu0 0.0
  %96 = vmatpush2.msra.mxu0 0.0
  %97 = vmatprep.subr.mxu0 0.0
  %98 = vmatpush2.msra.mxu0 0.0
  %99 = vmatprep.subr.mxu0 0.0
  %100 = vmatpush2.msra.mxu0 0.0
  %101 = vmatprep.subr.mxu0 0.0
  %102 = vmatpush2.msra.mxu0 0.0
  %103 = vmatprep.subr.mxu0 0.0
  %104 = vmatpush2.msra.mxu0 0.0
  %105 = vmatprep.subr.mxu0 0.0
  %106 = vmatpush2.msra.mxu0 0.0
  %107 = vmatprep.subr.mxu0 0.0
  %108 = vmatpush2.msra.mxu0 0.0
  %109 = vmatprep.subr.mxu0 0.0
  %110 = vmatpush2.msra.mxu0 0.0
  %111 = vmatprep.subr.mxu0 0.0
  %112 = vmatpush2.msra.mxu0 0.0
  %113 = vmatprep.subr.mxu0 0.0
  %114 = vmatpush2.msra.mxu0 0.0
  %115 = vmatprep.subr.mxu0 0.0
  %116 = vmatpush2.msra.mxu0 0.0
  %117 = vmatprep.subr.mxu0 0.0
  %118 = vmatpush2.msra.mxu0 0.0
  %119 = vmatprep.subr.mxu0 0.0
  %120 = vmatpush2.msra.mxu0 0.0
  %121 = vmatprep.mubr.f32.mxu0 0.0
  %122 = vmatmul.mubr.f32.gmra.mxu0 %v51
  %v123 = vpop.f32.mrf.mxu0
  %v124 = vadd.f32 0.0, %v123
  %v125 = vpop.f32.mrf.mxu0
  %126 = vdwg.mxu0
  %v127 = vmul.f32 %v124, 1.442695
  %v128 = vpow.pop %v127
  %130 = vrot.lane.b32.xlu0 %v37, 32
  %v131 = vpop.permute.xlu0 %130
  %vm133 = vcmask 261120
  %v134 = vsel %vm133, %v128, %v131
  %v136 = vlaneseq
  %v137 = vshrl.u32 %v136, 7
  %v138 = vsub.s32 0, %v137
  %v139 = vrot.slane %v44, %v138
  %vm141 = vcmask 293888
  %v143 = vsel %vm141, %v134, 0
  %v146 = vsel %vm53, %v43, 0
  %148 = vmatprep.subr.mxu0 0.0
  %149 = vmatpush1.msra.mxu0 0.0
  %150 = vmatprep.subr.mxu0 0.0
  %151 = vmatpush1.msra.mxu0 0.0
  %152 = vmatprep.subr.mxu0 0.0
  %153 = vmatpush1.msra.mxu0 0.0
  %154 = vmatprep.subr.mxu0 0.0
  %155 = vmatpush1.msra.mxu0 0.0
  %156 = vmatprep.subr.mxu0 0.0
  %157 = vmatpush1.msra.mxu0 0.0
  %158 = vmatprep.subr.mxu0 0.0
  %159 = vmatpush1.msra.mxu0 0.0
  %160 = vmatprep.subr.mxu0 0.0
  %161 = vmatpush1.msra.mxu0 0.0
  %162 = vmatprep.subr.mxu0 0.0
  %163 = vmatpush1.msra.mxu0 0.0
  %164 = vmatprep.subr.mxu0 0.0
  %165 = vmatpush1.msra.mxu0 0.0
  %166 = vmatprep.subr.mxu0 0.0
  %167 = vmatpush1.msra.mxu0 0.0
  %168 = vmatprep.subr.mxu0 0.0
  %169 = vmatpush1.msra.mxu0 0.0
  %170 = vmatprep.subr.mxu0 0.0
  %171 = vmatpush1.msra.mxu0 %v146
  %172 = vmatprep.subr.mxu0 0.0
  %173 = vmatpush1.msra.mxu0 %v42
  %174 = vmatprep.subr.mxu0 0.0
  %175 = vmatpush1.msra.mxu0 %v41
  %176 = vmatprep.subr.mxu0 0.0
  %177 = vmatpush1.msra.mxu0 %v40
  %178 = vmatprep.subr.mxu0 0.0
  %179 = vmatpush1.msra.mxu0 %v39
  %180 = vmatprep.subr.mxu0 0.0
  %181 = vmatpush2.msra.mxu0 0.0
  %182 = vmatprep.subr.mxu0 0.0
  %183 = vmatpush2.msra.mxu0 0.0
  %184 = vmatprep.subr.mxu0 0.0
  %185 = vmatpush2.msra.mxu0 0.0
  %186 = vmatprep.subr.mxu0 0.0
  %187 = vmatpush2.msra.mxu0 0.0
  %188 = vmatprep.subr.mxu0 0.0
  %189 = vmatpush2.msra.mxu0 0.0
  %190 = vmatprep.subr.mxu0 0.0
  %191 = vmatpush2.msra.mxu0 0.0
  %192 = vmatprep.subr.mxu0 0.0
  %193 = vmatpush2.msra.mxu0 0.0
  %194 = vmatprep.subr.mxu0 0.0
  %195 = vmatpush2.msra.mxu0 0.0
  %196 = vmatprep.subr.mxu0 0.0
  %197 = vmatpush2.msra.mxu0 0.0
  %198 = vmatprep.subr.mxu0 0.0
  %199 = vmatpush2.msra.mxu0 0.0
  %200 = vmatprep.subr.mxu0 0.0
  %201 = vmatpush2.msra.mxu0 0.0
  %202 = vmatprep.subr.mxu0 0.0
  %203 = vmatpush2.msra.mxu0 0.0
  %204 = vmatprep.subr.mxu0 0.0
  %205 = vmatpush2.msra.mxu0 0.0
  %206 = vmatprep.subr.mxu0 0.0
  %207 = vmatpush2.msra.mxu0 0.0
  %208 = vmatprep.subr.mxu0 0.0
  %209 = vmatpush2.msra.mxu0 0.0
  %210 = vmatprep.subr.mxu0 0.0
  %211 = vmatpush2.msra.mxu0 0.0
  %212 = vmatprep.mubr.f32.mxu0 0.0
  %213 = vmatmul.mubr.f32.gmra.mxu0 %v143
  %v214 = vpop.f32.mrf.mxu0
  %v215 = vadd.f32 %v139, %v214
  %v216 = vpop.f32.mrf.mxu0
  %217 = vdwg.mxu0
  %v218 = vld [vmem:[%s4] sm:$0xff]
  %v219 = vld [vmem:[%s5] sm:$0xff]
  %v220 = vld [vmem:[%s5 + $0x8] sm:$0xff]
  %v221 = vld [vmem:[%s5 + $0x10] sm:$0xff]
  %v222 = vld [vmem:[%s5 + $0x18] sm:$0xff]
  %v223 = vld [vmem:[%s5 + $0x20] sm:$0xff]
  %v224 = vld [vmem:[%s6] sm:$0x1]
  %v225 = vand.u32 2147483647, %v215
  %v226 = vadd.f32 %v225, 1e-06
  %v227 = vlog2.pop %v226
  %v228 = vmul.f32 %v227, 0.6931472
  %vm229 = vcmask 64512
  %v231 = vsel %vm229, %v228, 0
  %233 = vmatprep.subr.mxu0 0.0
  %234 = vmatpush1.msra.mxu0 0.0
  %235 = vmatprep.subr.mxu0 0.0
  %236 = vmatpush1.msra.mxu0 0.0
  %237 = vmatprep.subr.mxu0 0.0
  %238 = vmatpush1.msra.mxu0 0.0
  %239 = vmatprep.subr.mxu0 0.0
  %240 = vmatpush1.msra.mxu0 0.0
  %241 = vmatprep.subr.mxu0 0.0
  %242 = vmatpush1.msra.mxu0 0.0
  %243 = vmatprep.subr.mxu0 0.0
  %244 = vmatpush1.msra.mxu0 0.0
  %245 = vmatprep.subr.mxu0 0.0
  %246 = vmatpush1.msra.mxu0 0.0
  %247 = vmatprep.subr.mxu0 0.0
  %248 = vmatpush1.msra.mxu0 0.0
  %249 = vmatprep.subr.mxu0 0.0
  %250 = vmatpush1.msra.mxu0 0.0
  %251 = vmatprep.subr.mxu0 0.0
  %252 = vmatpush1.msra.mxu0 0.0
  %253 = vmatprep.subr.mxu0 0.0
  %254 = vmatpush1.msra.mxu0 0.0
  %255 = vmatprep.subr.mxu0 0.0
  %256 = vmatpush1.msra.mxu0 0.0
  %257 = vmatprep.subr.mxu0 0.0
  %258 = vmatpush1.msra.mxu0 0.0
  %259 = vmatprep.subr.mxu0 0.0
  %260 = vmatpush1.msra.mxu0 0.0
  %261 = vmatprep.subr.mxu0 0.0
  %262 = vmatpush1.msra.mxu0 0.0
  %263 = vmatprep.subr.mxu0 0.0
  %264 = vmatpush1.msra.mxu0 %v218
  %265 = vmatprep.subr.mxu0 0.0
  %266 = vmatpush2.msra.mxu0 0.0
  %267 = vmatprep.subr.mxu0 0.0
  %268 = vmatpush2.msra.mxu0 0.0
  %269 = vmatprep.subr.mxu0 0.0
  %270 = vmatpush2.msra.mxu0 0.0
  %271 = vmatprep.subr.mxu0 0.0
  %272 = vmatpush2.msra.mxu0 0.0
  %273 = vmatprep.subr.mxu0 0.0
  %274 = vmatpush2.msra.mxu0 0.0
  %275 = vmatprep.subr.mxu0 0.0
  %276 = vmatpush2.msra.mxu0 0.0
  %277 = vmatprep.subr.mxu0 0.0
  %278 = vmatpush2.msra.mxu0 0.0
  %279 = vmatprep.subr.mxu0 0.0
  %280 = vmatpush2.msra.mxu0 0.0
  %281 = vmatprep.subr.mxu0 0.0
  %282 = vmatpush2.msra.mxu0 0.0
  %283 = vmatprep.subr.mxu0 0.0
  %284 = vmatpush2.msra.mxu0 0.0
  %285 = vmatprep.subr.mxu0 0.0
  %286 = vmatpush2.msra.mxu0 0.0
  %287 = vmatprep.subr.mxu0 0.0
  %288 = vmatpush2.msra.mxu0 0.0
  %289 = vmatprep.subr.mxu0 0.0
  %290 = vmatpush2.msra.mxu0 0.0
  %291 = vmatprep.subr.mxu0 0.0
  %292 = vmatpush2.msra.mxu0 0.0
  %293 = vmatprep.subr.mxu0 0.0
  %294 = vmatpush2.msra.mxu0 0.0
  %295 = vmatprep.subr.mxu0 0.0
  %296 = vmatpush2.msra.mxu0 0.0
  %297 = vmatprep.mubr.f32.mxu0 0.0
  %298 = vmatmul.mubr.f32.gmra.mxu0 %v231
  %v299 = vpop.f32.mrf.mxu0
  %v300 = vadd.f32 0.0, %v299
  %v301 = vpop.f32.mrf.mxu0
  %302 = vdwg.mxu0
  %v303 = vmul.f32 %v300, 1.442695
  %v304 = vpow.pop %v303
  %306 = vrot.lane.b32.xlu0 %v215, 32
  %v307 = vpop.permute.xlu0 %306
  %v309 = vsel %vm133, %v304, %v307
  %v311 = vlaneseq
  %v312 = vshrl.u32 %v311, 7
  %v313 = vsub.s32 0, %v312
  %v314 = vrot.slane %v224, %v313
  %vm316 = vcmask 326656
  %v318 = vsel %vm316, %v309, 0
  %320 = vmatprep.subr.mxu0 0.0
  %321 = vmatpush1.msra.mxu0 0.0
  %322 = vmatprep.subr.mxu0 0.0
  %323 = vmatpush1.msra.mxu0 0.0
  %324 = vmatprep.subr.mxu0 0.0
  %325 = vmatpush1.msra.mxu0 0.0
  %326 = vmatprep.subr.mxu0 0.0
  %327 = vmatpush1.msra.mxu0 0.0
  %328 = vmatprep.subr.mxu0 0.0
  %329 = vmatpush1.msra.mxu0 0.0
  %330 = vmatprep.subr.mxu0 0.0
  %331 = vmatpush1.msra.mxu0 0.0
  %332 = vmatprep.subr.mxu0 0.0
  %333 = vmatpush1.msra.mxu0 0.0
  %334 = vmatprep.subr.mxu0 0.0
  %335 = vmatpush1.msra.mxu0 0.0
  %336 = vmatprep.subr.mxu0 0.0
  %337 = vmatpush1.msra.mxu0 0.0
  %338 = vmatprep.subr.mxu0 0.0
  %339 = vmatpush1.msra.mxu0 0.0
  %340 = vmatprep.subr.mxu0 0.0
  %341 = vmatpush1.msra.mxu0 0.0
  %342 = vmatprep.subr.mxu0 0.0
  %343 = vmatpush1.msra.mxu0 %v223
  %344 = vmatprep.subr.mxu0 0.0
  %345 = vmatpush1.msra.mxu0 %v222
  %346 = vmatprep.subr.mxu0 0.0
  %347 = vmatpush1.msra.mxu0 %v221
  %348 = vmatprep.subr.mxu0 0.0
  %349 = vmatpush1.msra.mxu0 %v220
  %350 = vmatprep.subr.mxu0 0.0
  %351 = vmatpush1.msra.mxu0 %v219
  %352 = vmatprep.subr.mxu0 0.0
  %353 = vmatpush2.msra.mxu0 0.0
  %354 = vmatprep.subr.mxu0 0.0
  %355 = vmatpush2.msra.mxu0 0.0
  %356 = vmatprep.subr.mxu0 0.0
  %357 = vmatpush2.msra.mxu0 0.0
  %358 = vmatprep.subr.mxu0 0.0
  %359 = vmatpush2.msra.mxu0 0.0
  %360 = vmatprep.subr.mxu0 0.0
  %361 = vmatpush2.msra.mxu0 0.0
  %362 = vmatprep.subr.mxu0 0.0
  %363 = vmatpush2.msra.mxu0 0.0
  %364 = vmatprep.subr.mxu0 0.0
  %365 = vmatpush2.msra.mxu0 0.0
  %366 = vmatprep.subr.mxu0 0.0
  %367 = vmatpush2.msra.mxu0 0.0
  %368 = vmatprep.subr.mxu0 0.0
  %369 = vmatpush2.msra.mxu0 0.0
  %370 = vmatprep.subr.mxu0 0.0
  %371 = vmatpush2.msra.mxu0 0.0
  %372 = vmatprep.subr.mxu0 0.0
  %373 = vmatpush2.msra.mxu0 0.0
  %374 = vmatprep.subr.mxu0 0.0
  %375 = vmatpush2.msra.mxu0 0.0
  %376 = vmatprep.subr.mxu0 0.0
  %377 = vmatpush2.msra.mxu0 0.0
  %378 = vmatprep.subr.mxu0 0.0
  %379 = vmatpush2.msra.mxu0 0.0
  %380 = vmatprep.subr.mxu0 0.0
  %381 = vmatpush2.msra.mxu0 0.0
  %382 = vmatprep.subr.mxu0 0.0
  %383 = vmatpush2.msra.mxu0 0.0
  %384 = vmatprep.mubr.f32.mxu0 0.0
  %385 = vmatmul.mubr.f32.gmra.mxu0 %v318
  %v386 = vpop.f32.mrf.mxu0
  %v387 = vadd.f32 %v314, %v386
  %v388 = vpop.f32.mrf.mxu0
  %389 = vdwg.mxu0
  %v390 = vld [vmem:[%s7] sm:$0xff]
  %v391 = vld [vmem:[%s8] sm:$0xff]
  %v392 = vld [vmem:[%s8 + $0x8] sm:$0xff]
  %v393 = vld [vmem:[%s8 + $0x10] sm:$0xff]
  %v394 = vld [vmem:[%s8 + $0x18] sm:$0xff]
  %v395 = vld [vmem:[%s8 + $0x20] sm:$0xff]
  %v396 = vld [vmem:[#allocation2] sm:$0x1]
  %v397 = vand.u32 2147483647, %v387
  %v398 = vadd.f32 %v397, 1e-06
  %v399 = vlog2.pop %v398
  %v400 = vmul.f32 %v399, 0.6931472
  %v402 = vsel %vm229, %v400, 0
  %404 = vmatprep.subr.mxu0 0.0
  %405 = vmatpush1.msra.mxu0 0.0
  %406 = vmatprep.subr.mxu0 0.0
  %407 = vmatpush1.msra.mxu0 0.0
  %408 = vmatprep.subr.mxu0 0.0
  %409 = vmatpush1.msra.mxu0 0.0
  %410 = vmatprep.subr.mxu0 0.0
  %411 = vmatpush1.msra.mxu0 0.0
  %412 = vmatprep.subr.mxu0 0.0
  %413 = vmatpush1.msra.mxu0 0.0
  %414 = vmatprep.subr.mxu0 0.0
  %415 = vmatpush1.msra.mxu0 0.0
  %416 = vmatprep.subr.mxu0 0.0
  %417 = vmatpush1.msra.mxu0 0.0
  %418 = vmatprep.subr.mxu0 0.0
  %419 = vmatpush1.msra.mxu0 0.0
  %420 = vmatprep.subr.mxu0 0.0
  %421 = vmatpush1.msra.mxu0 0.0
  %422 = vmatprep.subr.mxu0 0.0
  %423 = vmatpush1.msra.mxu0 0.0
  %424 = vmatprep.subr.mxu0 0.0
  %425 = vmatpush1.msra.mxu0 0.0
  %426 = vmatprep.subr.mxu0 0.0
  %427 = vmatpush1.msra.mxu0 0.0
  %428 = vmatprep.subr.mxu0 0.0
  %429 = vmatpush1.msra.mxu0 0.0
  %430 = vmatprep.subr.mxu0 0.0
  %431 = vmatpush1.msra.mxu0 0.0
  %432 = vmatprep.subr.mxu0 0.0
  %433 = vmatpush1.msra.mxu0 0.0
  %434 = vmatprep.subr.mxu0 0.0
  %435 = vmatpush1.msra.mxu0 %v390
  %436 = vmatprep.subr.mxu0 0.0
  %437 = vmatpush2.msra.mxu0 0.0
  %438 = vmatprep.subr.mxu0 0.0
  %439 = vmatpush2.msra.mxu0 0.0
  %440 = vmatprep.subr.mxu0 0.0
  %441 = vmatpush2.msra.mxu0 0.0
  %442 = vmatprep.subr.mxu0 0.0
  %443 = vmatpush2.msra.mxu0 0.0
  %444 = vmatprep.subr.mxu0 0.0
  %445 = vmatpush2.msra.mxu0 0.0
  %446 = vmatprep.subr.mxu0 0.0
  %447 = vmatpush2.msra.mxu0 0.0
  %448 = vmatprep.subr.mxu0 0.0
  %449 = vmatpush2.msra.mxu0 0.0
  %450 = vmatprep.subr.mxu0 0.0
  %451 = vmatpush2.msra.mxu0 0.0
  %452 = vmatprep.subr.mxu0 0.0
  %453 = vmatpush2.msra.mxu0 0.0
  %454 = vmatprep.subr.mxu0 0.0
  %455 = vmatpush2.msra.mxu0 0.0
  %456 = vmatprep.subr.mxu0 0.0
  %457 = vmatpush2.msra.mxu0 0.0
  %458 = vmatprep.subr.mxu0 0.0
  %459 = vmatpush2.msra.mxu0 0.0
  %460 = vmatprep.subr.mxu0 0.0
  %461 = vmatpush2.msra.mxu0 0.0
  %462 = vmatprep.subr.mxu0 0.0
  %463 = vmatpush2.msra.mxu0 0.0
  %464 = vmatprep.subr.mxu0 0.0
  %465 = vmatpush2.msra.mxu0 0.0
  %466 = vmatprep.subr.mxu0 0.0
  %467 = vmatpush2.msra.mxu0 0.0
  %468 = vmatprep.mubr.f32.mxu0 0.0
  %469 = vmatmul.mubr.f32.gmra.mxu0 %v402
  %v470 = vpop.f32.mrf.mxu0
  %v471 = vadd.f32 0.0, %v470
  %v472 = vpop.f32.mrf.mxu0
  %473 = vdwg.mxu0
  %v474 = vmul.f32 %v471, 1.442695
  %v475 = vpow.pop %v474
  %477 = vrot.lane.b32.xlu0 %v387, 32
  %v478 = vpop.permute.xlu0 %477
  %v480 = vsel %vm133, %v475, %v478
  %v482 = vlaneseq
  %v483 = vshrl.u32 %v482, 7
  %v484 = vsub.s32 0, %v483
  %v485 = vrot.slane %v396, %v484
  %v488 = vsel %vm316, %v480, 0
  %490 = vmatprep.subr.mxu0 0.0
  %491 = vmatpush1.msra.mxu0 0.0
  %492 = vmatprep.subr.mxu0 0.0
  %493 = vmatpush1.msra.mxu0 0.0
  %494 = vmatprep.subr.mxu0 0.0
  %495 = vmatpush1.msra.mxu0 0.0
  %496 = vmatprep.subr.mxu0 0.0
  %497 = vmatpush1.msra.mxu0 0.0
  %498 = vmatprep.subr.mxu0 0.0
  %499 = vmatpush1.msra.mxu0 0.0
  %500 = vmatprep.subr.mxu0 0.0
  %501 = vmatpush1.msra.mxu0 0.0
  %502 = vmatprep.subr.mxu0 0.0
  %503 = vmatpush1.msra.mxu0 0.0
  %504 = vmatprep.subr.mxu0 0.0
  %505 = vmatpush1.msra.mxu0 0.0
  %506 = vmatprep.subr.mxu0 0.0
  %507 = vmatpush1.msra.mxu0 0.0
  %508 = vmatprep.subr.mxu0 0.0
  %509 = vmatpush1.msra.mxu0 0.0
  %510 = vmatprep.subr.mxu0 0.0
  %511 = vmatpush1.msra.mxu0 0.0
  %512 = vmatprep.subr.mxu0 0.0
  %513 = vmatpush1.msra.mxu0 %v395
  %514 = vmatprep.subr.mxu0 0.0
  %515 = vmatpush1.msra.mxu0 %v394
  %516 = vmatprep.subr.mxu0 0.0
  %517 = vmatpush1.msra.mxu0 %v393
  %518 = vmatprep.subr.mxu0 0.0
  %519 = vmatpush1.msra.mxu0 %v392
  %520 = vmatprep.subr.mxu0 0.0
  %521 = vmatpush1.msra.mxu0 %v391
  %522 = vmatprep.subr.mxu0 0.0
  %523 = vmatpush2.msra.mxu0 0.0
  %524 = vmatprep.subr.mxu0 0.0
  %525 = vmatpush2.msra.mxu0 0.0
  %526 = vmatprep.subr.mxu0 0.0
  %527 = vmatpush2.msra.mxu0 0.0
  %528 = vmatprep.subr.mxu0 0.0
  %529 = vmatpush2.msra.mxu0 0.0
  %530 = vmatprep.subr.mxu0 0.0
  %531 = vmatpush2.msra.mxu0 0.0
  %532 = vmatprep.subr.mxu0 0.0
  %533 = vmatpush2.msra.mxu0 0.0
  %534 = vmatprep.subr.mxu0 0.0
  %535 = vmatpush2.msra.mxu0 0.0
  %536 = vmatprep.subr.mxu0 0.0
  %537 = vmatpush2.msra.mxu0 0.0
  %538 = vmatprep.subr.mxu0 0.0
  %539 = vmatpush2.msra.mxu0 0.0
  %540 = vmatprep.subr.mxu0 0.0
  %541 = vmatpush2.msra.mxu0 0.0
  %542 = vmatprep.subr.mxu0 0.0
  %543 = vmatpush2.msra.mxu0 0.0
  %544 = vmatprep.subr.mxu0 0.0
  %545 = vmatpush2.msra.mxu0 0.0
  %546 = vmatprep.subr.mxu0 0.0
  %547 = vmatpush2.msra.mxu0 0.0
  %548 = vmatprep.subr.mxu0 0.0
  %549 = vmatpush2.msra.mxu0 0.0
  %550 = vmatprep.subr.mxu0 0.0
  %551 = vmatpush2.msra.mxu0 0.0
  %552 = vmatprep.subr.mxu0 0.0
  %553 = vmatpush2.msra.mxu0 0.0
  %554 = vmatprep.mubr.f32.mxu0 0.0
  %555 = vmatmul.mubr.f32.gmra.mxu0 %v488
  %v556 = vpop.f32.mrf.mxu0
  %v557 = vadd.f32 %v485, %v556
  %v558 = vpop.f32.mrf.mxu0
  %559 = vdwg.mxu0
  %vm560 = vcmask 1024
  %561 = vst.msk [vmem:[%s10] sm:$0x3] %vm560, %v557
  // Predicated region
  $region42: #{fused_eql_forward.1} parent=0 // pred_check
    _
  $region43: #{fused_eql_forward.1} parent=0 // pred_check_branch
    %563 = sbr.rel (0) target = $region45
  $region44: #{fused_eql_forward.1} parent=0 // pred_region
    _
  $region45: #{fused_eql_forward.1} parent=0 // pred_fallthru
    _
  // Predicated region
  $region46: #{fused_eql_forward.1} parent=0 // pred_check
    _
  $region47: #{fused_eql_forward.1} parent=0 // pred_check_branch
    %565 = sbr.rel (0) target = $region49
  $region48: #{fused_eql_forward.1} parent=0 // pred_region
    _
  $region49: #{fused_eql_forward.1} parent=0 // pred_fallthru
    _

</llo_original>
